<compile_context>
chip_gen: v7x
topology: tpu7x:2x2x1
jax: 0.10.0
libtpu: 0.0.40
codegen_flags: <defaults>
</compile_context>

<pallas_src>
import functools

import jax
import jax.numpy as jnp
from jax.experimental import pallas as pl
from jax.experimental.pallas import tpu as pltpu


def _ffn_kernel(x_ref, w1_ref, b1_ref, w2_ref, b2_ref, g_ref, beta_ref,
                o_ref, acc_ref, *, eps, matmul_dtype):
    # x_ref   : (TM, D)  row tile (resident across the H axis)
    # w1_ref  : (D,  TH) fc1 weight column block     b1_ref: (1, TH)
    # w2_ref  : (TH, D)  fc2 weight row block        b2_ref: (1, D)
    # g_ref/beta_ref : (1, D) LayerNorm params (grid-invariant)
    # o_ref   : (TM, D)  output row tile (written on the last H step)
    # acc_ref : (TM, D)  f32 scratch accumulating fc2 partials over H
    h_idx = pl.program_id(1)
    n_h = pl.num_programs(1)

    # Hoist tile reads once per step (JAX does not CSE broadcast_in_dim).
    x_in = x_ref[...]
    w1 = w1_ref[...]
    w2 = w2_ref[...]
    if matmul_dtype is not None:
        # Narrow dtype into the MXU; f32 accumulate; f32 elementwise math.
        x_mm = x_in.astype(matmul_dtype)
        w1 = w1.astype(matmul_dtype)
        w2 = w2.astype(matmul_dtype)
    else:
        x_mm = x_in

    b1 = b1_ref[...].astype(jnp.float32)

    # fc1 column block + ReLU (ReLU is elementwise over H, so H-tiling is exact).
    h = jnp.dot(x_mm, w1, preferred_element_type=jnp.float32) + b1
    h = jnp.maximum(h, 0.0)

    # fc2 partial product for this hidden block; accumulate in f32 VMEM scratch.
    partial = jnp.dot(h.astype(w2.dtype), w2, preferred_element_type=jnp.float32)

    @pl.when(h_idx == 0)
    def _():
        acc_ref[...] = jnp.zeros_like(acc_ref)

    acc_ref[...] += partial

    # Epilogue on the last hidden block: fc2 bias + residual + LayerNorm.
    @pl.when(h_idx == n_h - 1)
    def _():
        b2 = b2_ref[...].astype(jnp.float32)
        g = g_ref[...].astype(jnp.float32)
        beta = beta_ref[...].astype(jnp.float32)

        z = acc_ref[...] + b2 + x_in.astype(jnp.float32)

        # Fused single reduction pass: mean and E[z^2] together.
        inv_d = 1.0 / z.shape[-1]
        mean = jnp.sum(z, axis=-1, keepdims=True) * inv_d
        mean_sq = jnp.sum(z * z, axis=-1, keepdims=True) * inv_d
        var = jnp.maximum(mean_sq - mean * mean, 0.0)

        out = (z - mean) * jax.lax.rsqrt(var + eps) * g + beta
        o_ref[...] = out.astype(o_ref.dtype)


def _round_up(v, m):
    return ((v + m - 1) // m) * m


def _vmem_capacity_bytes(default_bytes=64 * 1024 * 1024):
    # Generation-aware VMEM capacity (64 MiB v7x, 128 MiB v5e/v6e); safe fallback.
    try:
        cap = int(pltpu.get_tpu_info().vmem_capacity_bytes)
        if cap > 0:
            return cap
    except Exception:
        pass
    return default_bytes


def feedforward_pallas(x, w1, b1, w2, b2, gamma, beta, *, eps=1e-6,
                       tm=512, th=1024, matmul_dtype=None):
    """x: (B, S, D). w1: (D, H), w2: (H, D). Returns LayerNorm(x + fc2(relu(fc1(x))))."""
    B, S, D = x.shape
    H = w1.shape[1]
    M = B * S

    # ---- row tile (parallel axis) ------------------------------------------
    # bf16 rows pack two-per-sublane: round the row tile to 16 then, else 8.
    row_mult = 8 if jnp.dtype(x.dtype).itemsize >= 4 else 16
    if M <= row_mult:
        tm = M                                     # full-dim block is always legal
    else:
        # >= 2 row steps so v7x's second TensorCore is used; large tile otherwise.
        tm = min(int(tm), pl.cdiv(M, 2))
        tm = min(_round_up(tm, row_mult), _round_up(M, row_mult))
    grid_m = pl.cdiv(M, tm)
    # Ragged last row-tile: handled by Pallas masking; no host pad / slice passes.

    # ---- hidden tile (reduction axis) --------------------------------------
    # th must divide H exactly (a ragged hidden block would let undefined OOB
    # weight values contaminate every output column) and should be a multiple of
    # 256 so the 256x256 MXUs on v6e/v7x stay full.
    th = min(int(th), H)
    if th >= H or H % 256 != 0:
        th = H
    else:
        th = max(256, (th // 256) * 256)
        while th > 256 and H % th != 0:
            th -= 256
        if H % th != 0:
            th = H
    grid_h = pl.cdiv(H, th)

    x2 = x.reshape(M, D)
    b1_2 = b1.reshape(1, H)
    b2_2 = b2.reshape(1, D)
    g_2 = gamma.reshape(1, D)
    beta_2 = beta.reshape(1, D)

    # ---- VMEM budget (explicit, generation-aware cap) -----------------------
    isz = lambda a: jnp.dtype(a.dtype).itemsize
    vmem_est = (
        2 * tm * D * isz(x2)             # x row tiles (2 pipeline buffers)
        + 2 * tm * D * isz(x2)           # output row tiles
        + 2 * D * th * isz(w1)           # w1 hidden blocks
        + 2 * th * D * isz(w2)           # w2 hidden blocks
        + 2 * (th + 3 * D) * 4           # b1 block + b2/gamma/beta
        + tm * D * 4                     # f32 accumulator scratch
        + tm * th * 4 + 3 * tm * D * 4   # f32 intermediates (h, LN temps)
    )
    cap = _vmem_capacity_bytes()
    vmem_limit = int(min(max(2 * vmem_est, 32 * 1024 * 1024), cap))

    kernel = functools.partial(_ffn_kernel, eps=eps, matmul_dtype=matmul_dtype)

    out2 = pl.pallas_call(
        kernel,
        out_shape=jax.ShapeDtypeStruct((M, D), x.dtype),
        grid_spec=pltpu.PrefetchScalarGridSpec(
            num_scalar_prefetch=0,
            grid=(grid_m, grid_h),                            # reduction axis last
            in_specs=[
                pl.BlockSpec((tm, D), lambda i, h: (i, 0)),   # x rows (resident over h)
                # If profiling shows exposed DMA at small th, sweep
                # pipeline_mode=pl.Buffered(3) on the two weight specs below.
                pl.BlockSpec((D, th), lambda i, h: (0, h)),   # w1 column block
                pl.BlockSpec((1, th), lambda i, h: (0, h)),   # b1 block
                pl.BlockSpec((th, D), lambda i, h: (h, 0)),   # w2 row block
                pl.BlockSpec((1, D), lambda i, h: (0, 0)),    # b2
                pl.BlockSpec((1, D), lambda i, h: (0, 0)),    # ln gamma
                pl.BlockSpec((1, D), lambda i, h: (0, 0)),    # ln beta
            ],
            out_specs=pl.BlockSpec((tm, D), lambda i, h: (i, 0)),
            scratch_shapes=[pltpu.VMEM((tm, D), jnp.float32)],
        ),
        compiler_params=pltpu.CompilerParams(
            dimension_semantics=("parallel", "arbitrary"),
            vmem_limit_bytes=vmem_limit,
        ),
    )(x2, w1, b1_2, w2, b2_2, g_2, beta_2)

    return out2.reshape(B, S, D)


def reference_jax(x, w1, b1, w2, b2, gamma, beta, eps=1e-6):
    h = jnp.maximum(x @ w1 + b1, 0.0)
    y = h @ w2 + b2
    z = y + x
    mean = jnp.mean(z, axis=-1, keepdims=True)
    var = jnp.mean((z - mean) ** 2, axis=-1, keepdims=True)
    return (z - mean) * jax.lax.rsqrt(var + eps) * gamma + beta


if __name__ == "__main__":
    # Small but MXU-friendly demo shapes: D and H are multiples of 256 so the
    # 256x256 MXUs on v6e/v7x are fully used; M = 128 rows -> 2 parallel row
    # tiles of 64, and th=256 -> 2 hidden-reduction steps (exercises the
    # accumulator + epilogue path).
    batch, seq, in_dim, hid_dim = 2, 64, 256, 512

    key = jax.random.PRNGKey(0)
    kx, kw1, kb1, kw2, kb2 = jax.random.split(key, 5)

    x = jax.random.normal(kx, (batch, seq, in_dim), dtype=jnp.float32)

    # Deterministic parameter init (PyTorch-Linear-like uniform ranges).
    bound1 = 1.0 / (in_dim ** 0.5)
    bound2 = 1.0 / (hid_dim ** 0.5)
    w1 = jax.random.uniform(kw1, (in_dim, hid_dim), jnp.float32, -bound1, bound1)
    b1 = jax.random.uniform(kb1, (hid_dim,), jnp.float32, -bound1, bound1)
    w2 = jax.random.uniform(kw2, (hid_dim, in_dim), jnp.float32, -bound2, bound2)
    b2 = jax.random.uniform(kb2, (in_dim,), jnp.float32, -bound2, bound2)
    gamma = jnp.ones((in_dim,), jnp.float32)   # LayerNorm default weight
    beta = jnp.zeros((in_dim,), jnp.float32)   # LayerNorm default bias

    ref = reference_jax(x, w1, b1, w2, b2, gamma, beta)

    # Full-precision path (native dtype into the MXU): tight tolerance.
    out = feedforward_pallas(x, w1, b1, w2, b2, gamma, beta, th=256)
    out = jax.block_until_ready(out)
    assert out.shape == x.shape
    assert jnp.allclose(out, ref, atol=1e-4, rtol=1e-4), "f32 path mismatch"

    # bf16-into-MXU path (the recommended setting on v6e/v7x): f32 accumulate and
    # f32 LayerNorm, so only the matmul inputs are rounded to bf16.
    out_bf16 = feedforward_pallas(x, w1, b1, w2, b2, gamma, beta, th=256,
                                  matmul_dtype=jnp.bfloat16)
    out_bf16 = jax.block_until_ready(out_bf16)
    assert bool(jnp.all(jnp.isfinite(out_bf16)))
    assert jnp.allclose(out_bf16, ref, atol=1e-1, rtol=1e-1), "bf16 path mismatch"

    print("KERNEL_OK")
</pallas_src>

<mosaic_0001>
module attributes {stable_mosaic.version = 11 : i64} {
  func.func @_ffn_kernel(%arg0: i32, %arg1: i32, %arg2: memref<64x256xf32, #tpu.memory_space<vmem>>, %arg3: memref<256x256xf32, #tpu.memory_space<vmem>>, %arg4: memref<1x256xf32, #tpu.memory_space<vmem>>, %arg5: memref<256x256xf32, #tpu.memory_space<vmem>>, %arg6: memref<1x256xf32, #tpu.memory_space<vmem>>, %arg7: memref<1x256xf32, #tpu.memory_space<vmem>>, %arg8: memref<1x256xf32, #tpu.memory_space<vmem>>, %arg9: memref<64x256xf32, #tpu.memory_space<vmem>>, %arg10: memref<64x256xf32, #tpu.memory_space<vmem>>) attributes {dimension_semantics = [#tpu.dimension_semantics<parallel>, #tpu.dimension_semantics<arbitrary>], iteration_bounds = array<i64: 2, 2>, scalar_prefetch = 0 : i64, scratch_operands = 1 : i64, tpu.core_type = #tpu.core_type<tc>, window_params = [{transform_indices = @transform_0, window_bounds = array<i64: 64, 256>}, {transform_indices = @transform_1, window_bounds = array<i64: 256, 256>}, {transform_indices = @transform_2, window_bounds = array<i64: 1, 256>}, {transform_indices = @transform_3, window_bounds = array<i64: 256, 256>}, {pipeline_mode = #tpu.pipeline_mode<synchronous>, transform_indices = @transform_4, window_bounds = array<i64: 1, 256>}, {pipeline_mode = #tpu.pipeline_mode<synchronous>, transform_indices = @transform_5, window_bounds = array<i64: 1, 256>}, {pipeline_mode = #tpu.pipeline_mode<synchronous>, transform_indices = @transform_6, window_bounds = array<i64: 1, 256>}, {transform_indices = @transform_7, window_bounds = array<i64: 64, 256>}]} {
    %c0 = arith.constant 0 : index
    %c0_0 = arith.constant 0 : index
    %0 = vector.load %arg2[%c0, %c0_0] : memref<64x256xf32, #tpu.memory_space<vmem>>, vector<64x256xf32>
    %c0_1 = arith.constant 0 : index
    %c0_2 = arith.constant 0 : index
    %1 = vector.load %arg3[%c0_1, %c0_2] : memref<256x256xf32, #tpu.memory_space<vmem>>, vector<256x256xf32>
    %c0_3 = arith.constant 0 : index
    %c0_4 = arith.constant 0 : index
    %2 = vector.load %arg5[%c0_3, %c0_4] : memref<256x256xf32, #tpu.memory_space<vmem>>, vector<256x256xf32>
    %c0_5 = arith.constant 0 : index
    %c0_6 = arith.constant 0 : index
    %3 = vector.load %arg4[%c0_5, %c0_6] : memref<1x256xf32, #tpu.memory_space<vmem>>, vector<1x256xf32>
    %cst = arith.constant dense<0.000000e+00> : vector<64x256xf32>
    %4 = tpu.matmul %0, %1, %cst {dimension_numbers = #tpu.dot_dimension_numbers<[1], [0], [0], [1], [0, 0, 1, 1], [], []>} : vector<64x256xf32>, vector<256x256xf32>, vector<64x256xf32> -> vector<64x256xf32>
    %5 = vector.broadcast %3 : vector<1x256xf32> to vector<64x256xf32>
    %6 = arith.addf %4, %5 : vector<64x256xf32>
    %cst_7 = arith.constant 0.000000e+00 : f32
    %7 = vector.broadcast %cst_7 : f32 to vector<64x256xf32>
    %8 = arith.maximumf %6, %7 : vector<64x256xf32>
    %cst_8 = arith.constant dense<0.000000e+00> : vector<64x256xf32>
    %9 = tpu.matmul %8, %2, %cst_8 {dimension_numbers = #tpu.dot_dimension_numbers<[1], [0], [0], [1], [0, 0, 1, 1], [], []>} : vector<64x256xf32>, vector<256x256xf32>, vector<64x256xf32> -> vector<64x256xf32>
    %c0_i32 = arith.constant 0 : i32
    %10 = arith.cmpi eq, %arg1, %c0_i32 : i32
    %11 = arith.extui %10 : i1 to i32
    %c0_i32_9 = arith.constant 0 : i32
    %12 = arith.cmpi ne, %11, %c0_i32_9 : i32
    scf.if %12 {
      %cst_15 = arith.constant 0.000000e+00 : f32
      %19 = vector.broadcast %cst_15 : f32 to vector<64x256xf32>
      %c0_16 = arith.constant 0 : index
      %c0_17 = arith.constant 0 : index
      %20 = vector.load %arg10[%c0_16, %c0_17] : memref<64x256xf32, #tpu.memory_space<vmem>>, vector<64x256xf32>
      tpu.vector_store %arg10[%c0_16, %c0_17], %19 {strides = array<i32>} : memref<64x256xf32, #tpu.memory_space<vmem>>, vector<64x256xf32>,
    } else {
    }
    %c0_10 = arith.constant 0 : index
    %c0_11 = arith.constant 0 : index
    %13 = vector.load %arg10[%c0_10, %c0_11] : memref<64x256xf32, #tpu.memory_space<vmem>>, vector<64x256xf32>
    %14 = arith.addf %13, %9 : vector<64x256xf32>
    %c0_12 = arith.constant 0 : index
    %c0_13 = arith.constant 0 : index
    %15 = vector.load %arg10[%c0_12, %c0_13] : memref<64x256xf32, #tpu.memory_space<vmem>>, vector<64x256xf32>
    tpu.vector_store %arg10[%c0_12, %c0_13], %14 {strides = array<i32>} : memref<64x256xf32, #tpu.memory_space<vmem>>, vector<64x256xf32>,
    %c1_i32 = arith.constant 1 : i32
    %16 = arith.cmpi eq, %arg1, %c1_i32 : i32
    %17 = arith.extui %16 : i1 to i32
    %c0_i32_14 = arith.constant 0 : i32
    %18 = arith.cmpi ne, %17, %c0_i32_14 : i32
    scf.if %18 {
      %c0_15 = arith.constant 0 : index
      %c0_16 = arith.constant 0 : index
      %19 = vector.load %arg6[%c0_15, %c0_16] : memref<1x256xf32, #tpu.memory_space<vmem>>, vector<1x256xf32>
      %c0_17 = arith.constant 0 : index
      %c0_18 = arith.constant 0 : index
      %20 = vector.load %arg7[%c0_17, %c0_18] : memref<1x256xf32, #tpu.memory_space<vmem>>, vector<1x256xf32>
      %c0_19 = arith.constant 0 : index
      %c0_20 = arith.constant 0 : index
      %21 = vector.load %arg8[%c0_19, %c0_20] : memref<1x256xf32, #tpu.memory_space<vmem>>, vector<1x256xf32>
      %c0_21 = arith.constant 0 : index
      %c0_22 = arith.constant 0 : index
      %22 = vector.load %arg10[%c0_21, %c0_22] : memref<64x256xf32, #tpu.memory_space<vmem>>, vector<64x256xf32>
      %23 = vector.broadcast %19 : vector<1x256xf32> to vector<64x256xf32>
      %24 = arith.addf %22, %23 : vector<64x256xf32>
      %25 = arith.addf %24, %0 : vector<64x256xf32>
      %cst_23 = arith.constant dense<0.000000e+00> : vector<64xf32>
      %26 = vector.multi_reduction <add>, %25, %cst_23 [1] : vector<64x256xf32> to vector<64xf32>
      %27 = vector.shape_cast %26 : vector<64xf32> to vector<64x1xf32>
      %cst_24 = arith.constant 3.906250e-03 : f32
      %28 = vector.broadcast %cst_24 : f32 to vector<64x1xf32>
      %29 = arith.mulf %27, %28 : vector<64x1xf32>
      %30 = arith.mulf %25, %25 : vector<64x256xf32>
      %cst_25 = arith.constant dense<0.000000e+00> : vector<64xf32>
      %31 = vector.multi_reduction <add>, %30, %cst_25 [1] : vector<64x256xf32> to vector<64xf32>
      %32 = vector.shape_cast %31 : vector<64xf32> to vector<64x1xf32>
      %cst_26 = arith.constant 3.906250e-03 : f32
      %33 = vector.broadcast %cst_26 : f32 to vector<64x1xf32>
      %34 = arith.mulf %32, %33 : vector<64x1xf32>
      %35 = arith.mulf %29, %29 : vector<64x1xf32>
      %36 = arith.subf %34, %35 : vector<64x1xf32>
      %cst_27 = arith.constant 0.000000e+00 : f32
      %37 = vector.broadcast %cst_27 : f32 to vector<64x1xf32>
      %38 = arith.maximumf %36, %37 : vector<64x1xf32>
      %39 = vector.broadcast %29 : vector<64x1xf32> to vector<64x256xf32>
      %40 = arith.subf %25, %39 : vector<64x256xf32>
      %cst_28 = arith.constant 9.99999997E-7 : f32
      %41 = vector.broadcast %cst_28 : f32 to vector<64x1xf32>
      %42 = arith.addf %38, %41 : vector<64x1xf32>
      %43 = math.rsqrt %42 : vector<64x1xf32>
      %44 = vector.broadcast %43 : vector<64x1xf32> to vector<64x256xf32>
      %45 = arith.mulf %40, %44 : vector<64x256xf32>
      %46 = vector.broadcast %20 : vector<1x256xf32> to vector<64x256xf32>
      %47 = arith.mulf %45, %46 : vector<64x256xf32>
      %48 = vector.broadcast %21 : vector<1x256xf32> to vector<64x256xf32>
      %49 = arith.addf %47, %48 : vector<64x256xf32>
      %c0_29 = arith.constant 0 : index
      %c0_30 = arith.constant 0 : index
      %50 = vector.load %arg9[%c0_29, %c0_30] : memref<64x256xf32, #tpu.memory_space<vmem>>, vector<64x256xf32>
      tpu.vector_store %arg9[%c0_29, %c0_30], %49 {strides = array<i32>} : memref<64x256xf32, #tpu.memory_space<vmem>>, vector<64x256xf32>,
    } else {
    }
    return
  }
  func.func @transform_0(%arg0: i32, %arg1: i32) -> (i32, i32) {
    %c0_i32 = arith.constant 0 : i32
    %c0_i32_0 = arith.constant 0 : i32
    return %arg0, %c0_i32 : i32, i32
  }
  func.func @transform_1(%arg0: i32, %arg1: i32) -> (i32, i32) {
    %c0_i32 = arith.constant 0 : i32
    %c0_i32_0 = arith.constant 0 : i32
    return %c0_i32, %arg1 : i32, i32
  }
  func.func @transform_2(%arg0: i32, %arg1: i32) -> (i32, i32) {
    %c0_i32 = arith.constant 0 : i32
    %c0_i32_0 = arith.constant 0 : i32
    return %c0_i32, %arg1 : i32, i32
  }
  func.func @transform_3(%arg0: i32, %arg1: i32) -> (i32, i32) {
    %c0_i32 = arith.constant 0 : i32
    %c0_i32_0 = arith.constant 0 : i32
    return %arg1, %c0_i32 : i32, i32
  }
  func.func @transform_4(%arg0: i32, %arg1: i32) -> (i32, i32) {
    %c0_i32 = arith.constant 0 : i32
    %c0_i32_0 = arith.constant 0 : i32
    %c0_i32_1 = arith.constant 0 : i32
    return %c0_i32, %c0_i32_0 : i32, i32
  }
  func.func @transform_5(%arg0: i32, %arg1: i32) -> (i32, i32) {
    %c0_i32 = arith.constant 0 : i32
    %c0_i32_0 = arith.constant 0 : i32
    %c0_i32_1 = arith.constant 0 : i32
    return %c0_i32, %c0_i32_0 : i32, i32
  }
  func.func @transform_6(%arg0: i32, %arg1: i32) -> (i32, i32) {
    %c0_i32 = arith.constant 0 : i32
    %c0_i32_0 = arith.constant 0 : i32
    %c0_i32_1 = arith.constant 0 : i32
    return %c0_i32, %c0_i32_0 : i32, i32
  }
  func.func @transform_7(%arg0: i32, %arg1: i32) -> (i32, i32) {
    %c0_i32 = arith.constant 0 : i32
    %c0_i32_0 = arith.constant 0 : i32
    return %arg0, %c0_i32 : i32, i32
  }
}

</mosaic_0001>

<llo_original>
// kernel: tpu_custom_call.1
$region0: #{tpu_custom_call.1}
  #allocation0 [shape = 'u32[]', space=smem, size = 0x4, offset = 0x4, fixed_abs, tag = 'smem constant byte address 0x4 - core index']
  #allocation1 [shape = 'u32[144,128]{1,0:T(1,128)}', space=vmem, size = 0x12000, scoped, tag = 'internal scratch']
  #allocation2 [shape = 'f32[64,256]{1,0:T(8,128)}', space=vmem, size = 0x10000, scoped, tag = 'scratch operand']
  %s0 = inlined_call_operand.hbm [shape: f32[128,256], index: 0, kind: input, shape index: {}]
  %s1 = inlined_call_operand.hbm [shape: f32[256,512], index: 1, kind: input, shape index: {}]
  %s2 = inlined_call_operand.vmem [shape: f32[1,512], index: 2, kind: input, shape index: {}]
  %s3 = inlined_call_operand.hbm [shape: f32[512,256], index: 3, kind: input, shape index: {}]
  %s4 = inlined_call_operand.vmem [shape: f32[1,256], index: 4, kind: input, shape index: {}]
  %s5 = inlined_call_operand.vmem [shape: f32[1,256], index: 5, kind: input, shape index: {}]
  %s6 = inlined_call_operand.vmem [shape: f32[1,256], index: 6, kind: input, shape index: {}]
  %s7 = inlined_call_operand.hbm [shape: f32[128,256], index: 7, kind: output, shape index: {}]
  %s8 = sld [smem:[#allocation0]]
  $region81: #{tpu_custom_call.1} parent=0
    _
  %s10 = ssub.s32 1, %s8
  %s11 = scalar_select 0, %s10, %s8
  $region1: #{tpu_custom_call.1} parent=0
    #allocation3 [shape = 'u8[131072]{0}', space=vmem, size = 0x20000, scoped, tag = 'input window, operand 0']
    #allocation4 [shape = 's32[2]{0}', space=sflag, size = 0x8, scoped, tag = 'scoped memory for tpu_custom_call.1']
    #allocation5 [shape = 's32[2]{0}', space=sflag, size = 0x8, scoped, tag = 'scoped memory for tpu_custom_call.1']
    #allocation6 [shape = 'u8[524288]{0}', space=vmem, size = 0x80000, scoped, tag = 'input window, operand 1']
    #allocation7 [shape = 's32[2]{0}', space=sflag, size = 0x8, scoped, tag = 'scoped memory for tpu_custom_call.1']
    #allocation8 [shape = 'u8[524288]{0}', space=vmem, size = 0x80000, scoped, tag = 'input window, operand 3']
    #allocation9 [shape = 'u8[131072]{0}', space=vmem, size = 0x20000, scoped, tag = 'output window, operand 0']
    %12 = vsyncpa [#allocation4], 0
    %s13 = scalar_lea.sflag [#allocation4], 1
    %14 = vsyncpa %s13, 0
    %15 = vsyncpa [#allocation7], 0
    %s16 = scalar_lea.sflag [#allocation7], 1
    %17 = vsyncpa %s16, 0
    %18 = vsyncpa [#allocation5], 0
    %s19 = scalar_lea.sflag [#allocation5], 1
    %20 = vsyncpa %s19, 0
    loop: start=0, step=1, limit=6
    $region2: #{tpu_custom_call.1} parent=1 // loop_pre_header
      _
    $region3: #{tpu_custom_call.1} parent=1 // loop_header
      %s22 = sphi 0, %s26
      %p23 = scmp.ge.s32.totalorder %s22, 6
      %s29 = sphi 0, %s41
      %s30 = sphi 0, %s37
      %s31 = sphi 0, %s29
      %s32 = sphi 0, %s30
      %s33 = sphi 0, %s31
      %s34 = sphi 0, %s32
      %s44 = sphi 0, %s46
      %s47 = sphi 0, %s44
      %s48 = sphi 0, %s47
      %s64 = sphi 0, %s48
      %s70 = sphi 0, %s72
      %s73 = sphi 0, %s70
      %s74 = sphi 0, %s73
      %s90 = sphi 0, %s74
      %s96 = sphi 0, %s98
      %s99 = sphi 0, %s96
      %s100 = sphi 0, %s99
      %s116 = sphi 0, %s100
      %s122 = sphi 0, %s124
      %s125 = sphi 0, %s122
      %s126 = sphi 0, %s125
      %s142 = sphi 0, %s126
      %s146 = sphi 0, %s146
      %s148 = sphi 0, %s146
      %s149 = sphi 0, %s148
      %s163 = sphi 0, %s149
      %s167 = sphi 0, %s167
      %s169 = sphi 0, %s167
      %s170 = sphi 0, %s169
      %s184 = sphi 0, %s170
      %s188 = sphi 0, %s188
      %s190 = sphi 0, %s188
      %s191 = sphi 0, %s190
      %s205 = sphi 0, %s191
      %s211 = sphi 0, %s213
      %s214 = sphi 0, %s211
      %s215 = sphi 0, %s214
      %s231 = sphi 0, %s215
    $region4: #{tpu_custom_call.1} parent=1 // loop_header_branch
      %25 = sbr.rel (%p23) target = $region8
    $region5: #{tpu_custom_call.1} parent=1 // loop_body
      %s27 = ssub.s32 %s22, 1
      %s28 = ssub.s32 %s22, 2
      %s35 = sadd.s32 1, %s30
      %p36 = scmp.ge.s32.totalorder %s35, 2
      %s37 = scalar_select %p36, 0, %s35
      %s38 = sadd.s32 1, %s29
      %s39 = scalar_select %p36, %s38, %s29
      %p40 = scmp.ge.s32.totalorder %s39, 2
      %s41 = scalar_select %p40, 0, %s39
      %s42 = ssub.s32 %s29, %s41
      %p43 = scmp.eq.s32.totalorder %s42, 0
      %s45 = sadd.s32 %s44, 1
      %s46 = scalar_select %p43, %s44, %s45
      %p49 = pneg %p43
      %p50 = scmp.eq.s32.totalorder %s22, 3
      %p51 = por %p49, %p50
      %p52 = scmp.ne.s32.totalorder %s44, %s47
      %p53 = scmp.eq.s32.totalorder %s22, 0
      %p54 = por %p52, %p53
      %p55 = scmp.ne.s32.totalorder %s44, %s47
      %p56 = scmp.eq.s32.totalorder %s27, 3
      %p57 = por %p55, %p56
      %p58 = scmp.ne.s32.totalorder %s47, %s48
      %p59 = scmp.eq.s32.totalorder %s27, 0
      %p60 = por %p58, %p59
      %p61 = scmp.ne.s32.totalorder %s47, %s48
      %p62 = scmp.eq.s32.totalorder %s28, 3
      %p63 = por %p61, %p62
      %p65 = scmp.ne.s32.totalorder %s48, %s64
      %p66 = scmp.eq.s32.totalorder %s28, 0
      %p67 = por %p65, %p66
      %s68 = ssub.s32 %s30, %s37
      %p69 = scmp.eq.s32.totalorder %s68, 0
      %s71 = sadd.s32 %s70, 1
      %s72 = scalar_select %p69, %s70, %s71
      %p75 = pneg %p69
      %p76 = scmp.eq.s32.totalorder %s22, 3
      %p77 = por %p75, %p76
      %p78 = scmp.ne.s32.totalorder %s70, %s73
      %p79 = scmp.eq.s32.totalorder %s22, 0
      %p80 = por %p78, %p79
      %p81 = scmp.ne.s32.totalorder %s70, %s73
      %p82 = scmp.eq.s32.totalorder %s27, 3
      %p83 = por %p81, %p82
      %p84 = scmp.ne.s32.totalorder %s73, %s74
      %p85 = scmp.eq.s32.totalorder %s27, 0
      %p86 = por %p84, %p85
      %p87 = scmp.ne.s32.totalorder %s73, %s74
      %p88 = scmp.eq.s32.totalorder %s28, 3
      %p89 = por %p87, %p88
      %p91 = scmp.ne.s32.totalorder %s74, %s90
      %p92 = scmp.eq.s32.totalorder %s28, 0
      %p93 = por %p91, %p92
      %s94 = ssub.s32 %s30, %s37
      %p95 = scmp.eq.s32.totalorder %s94, 0
      %s97 = sadd.s32 %s96, 1
      %s98 = scalar_select %p95, %s96, %s97
      %p101 = pneg %p95
      %p102 = scmp.eq.s32.totalorder %s22, 3
      %p103 = por %p101, %p102
      %p104 = scmp.ne.s32.totalorder %s96, %s99
      %p105 = scmp.eq.s32.totalorder %s22, 0
      %p106 = por %p104, %p105
      %p107 = scmp.ne.s32.totalorder %s96, %s99
      %p108 = scmp.eq.s32.totalorder %s27, 3
      %p109 = por %p107, %p108
      %p110 = scmp.ne.s32.totalorder %s99, %s100
      %p111 = scmp.eq.s32.totalorder %s27, 0
      %p112 = por %p110, %p111
      %p113 = scmp.ne.s32.totalorder %s99, %s100
      %p114 = scmp.eq.s32.totalorder %s28, 3
      %p115 = por %p113, %p114
      %p117 = scmp.ne.s32.totalorder %s100, %s116
      %p118 = scmp.eq.s32.totalorder %s28, 0
      %p119 = por %p117, %p118
      %s120 = ssub.s32 %s30, %s37
      %p121 = scmp.eq.s32.totalorder %s120, 0
      %s123 = sadd.s32 %s122, 1
      %s124 = scalar_select %p121, %s122, %s123
      %p127 = pneg %p121
      %p128 = scmp.eq.s32.totalorder %s22, 3
      %p129 = por %p127, %p128
      %p130 = scmp.ne.s32.totalorder %s122, %s125
      %p131 = scmp.eq.s32.totalorder %s22, 0
      %p132 = por %p130, %p131
      %p133 = scmp.ne.s32.totalorder %s122, %s125
      %p134 = scmp.eq.s32.totalorder %s27, 3
      %p135 = por %p133, %p134
      %p136 = scmp.ne.s32.totalorder %s125, %s126
      %p137 = scmp.eq.s32.totalorder %s27, 0
      %p138 = por %p136, %p137
      %p139 = scmp.ne.s32.totalorder %s125, %s126
      %p140 = scmp.eq.s32.totalorder %s28, 3
      %p141 = por %p139, %p140
      %p143 = scmp.ne.s32.totalorder %s126, %s142
      %p144 = scmp.eq.s32.totalorder %s28, 0
      %p145 = por %p143, %p144
      %s147 = sadd.s32 %s146, 1
      %p150 = scmp.eq.s32.totalorder %s22, 3
      %p151 = scmp.ne.s32.totalorder %s146, %s148
      %p152 = scmp.eq.s32.totalorder %s22, 0
      %p153 = por %p151, %p152
      %p154 = scmp.ne.s32.totalorder %s146, %s148
      %p155 = scmp.eq.s32.totalorder %s27, 3
      %p156 = por %p154, %p155
      %p157 = scmp.ne.s32.totalorder %s148, %s149
      %p158 = scmp.eq.s32.totalorder %s27, 0
      %p159 = por %p157, %p158
      %p160 = scmp.ne.s32.totalorder %s148, %s149
      %p161 = scmp.eq.s32.totalorder %s28, 3
      %p162 = por %p160, %p161
      %p164 = scmp.ne.s32.totalorder %s149, %s163
      %p165 = scmp.eq.s32.totalorder %s28, 0
      %p166 = por %p164, %p165
      %s168 = sadd.s32 %s167, 1
      %p171 = scmp.eq.s32.totalorder %s22, 3
      %p172 = scmp.ne.s32.totalorder %s167, %s169
      %p173 = scmp.eq.s32.totalorder %s22, 0
      %p174 = por %p172, %p173
      %p175 = scmp.ne.s32.totalorder %s167, %s169
      %p176 = scmp.eq.s32.totalorder %s27, 3
      %p177 = por %p175, %p176
      %p178 = scmp.ne.s32.totalorder %s169, %s170
      %p179 = scmp.eq.s32.totalorder %s27, 0
      %p180 = por %p178, %p179
      %p181 = scmp.ne.s32.totalorder %s169, %s170
      %p182 = scmp.eq.s32.totalorder %s28, 3
      %p183 = por %p181, %p182
      %p185 = scmp.ne.s32.totalorder %s170, %s184
      %p186 = scmp.eq.s32.totalorder %s28, 0
      %p187 = por %p185, %p186
      %s189 = sadd.s32 %s188, 1
      %p192 = scmp.eq.s32.totalorder %s22, 3
      %p193 = scmp.ne.s32.totalorder %s188, %s190
      %p194 = scmp.eq.s32.totalorder %s22, 0
      %p195 = por %p193, %p194
      %p196 = scmp.ne.s32.totalorder %s188, %s190
      %p197 = scmp.eq.s32.totalorder %s27, 3
      %p198 = por %p196, %p197
      %p199 = scmp.ne.s32.totalorder %s190, %s191
      %p200 = scmp.eq.s32.totalorder %s27, 0
      %p201 = por %p199, %p200
      %p202 = scmp.ne.s32.totalorder %s190, %s191
      %p203 = scmp.eq.s32.totalorder %s28, 3
      %p204 = por %p202, %p203
      %p206 = scmp.ne.s32.totalorder %s191, %s205
      %p207 = scmp.eq.s32.totalorder %s28, 0
      %p208 = por %p206, %p207
      %s209 = ssub.s32 %s29, %s41
      %p210 = scmp.eq.s32.totalorder %s209, 0
      %s212 = sadd.s32 %s211, 1
      %s213 = scalar_select %p210, %s211, %s212
      %p216 = pneg %p210
      %p217 = scmp.eq.s32.totalorder %s22, 3
      %p218 = por %p216, %p217
      %p219 = scmp.ne.s32.totalorder %s211, %s214
      %p220 = scmp.eq.s32.totalorder %s22, 0
      %p221 = por %p219, %p220
      %p222 = scmp.ne.s32.totalorder %s211, %s214
      %p223 = scmp.eq.s32.totalorder %s27, 3
      %p224 = por %p222, %p223
      %p225 = scmp.ne.s32.totalorder %s214, %s215
      %p226 = scmp.eq.s32.totalorder %s27, 0
      %p227 = por %p225, %p226
      %p228 = scmp.ne.s32.totalorder %s214, %s215
      %p229 = scmp.eq.s32.totalorder %s28, 3
      %p230 = por %p228, %p229
      %p232 = scmp.ne.s32.totalorder %s215, %s231
      %p233 = scmp.eq.s32.totalorder %s28, 0
      %p234 = por %p232, %p233
      %p235 = scmp.le.s32.totalorder 1, %s22
      %p236 = scmp.lt.s32.totalorder %s22, 5
      %p237 = pnand %p235, %p236
      %p238 = pneg %p237
      // Predicated region
      $region9: #{tpu_custom_call.1} parent=5 // pred_check
        _
      $region10: #{tpu_custom_call.1} parent=5 // pred_check_branch
        %240 = sbr.rel (%p237) target = $region12
      $region11: #{tpu_custom_call.1} parent=5 // pred_region
        %s241 = ssub.s32 %s22, 1
        // Predicated region
        $region13: #{tpu_custom_call.1} parent=11 // pred_check
          %p242 = pneg %p159
        $region14: #{tpu_custom_call.1} parent=11 // pred_check_branch
          %244 = sbr.rel (%p242) target = $region16
        $region15: #{tpu_custom_call.1} parent=11 // pred_region
          _
        $region16: #{tpu_custom_call.1} parent=11 // pred_fallthru
          _
        // Predicated region
        $region17: #{tpu_custom_call.1} parent=11 // pred_check
          %p245 = pneg %p180
        $region18: #{tpu_custom_call.1} parent=11 // pred_check_branch
          %247 = sbr.rel (%p245) target = $region20
        $region19: #{tpu_custom_call.1} parent=11 // pred_region
          _
        $region20: #{tpu_custom_call.1} parent=11 // pred_fallthru
          _
        // Predicated region
        $region21: #{tpu_custom_call.1} parent=11 // pred_check
          %p248 = pneg %p201
        $region22: #{tpu_custom_call.1} parent=11 // pred_check_branch
          %250 = sbr.rel (%p248) target = $region24
        $region23: #{tpu_custom_call.1} parent=11 // pred_region
          _
        $region24: #{tpu_custom_call.1} parent=11 // pred_fallthru
          _
      $region12: #{tpu_custom_call.1} parent=5 // pred_fallthru
        _
      %p251 = scmp.lt.s32.totalorder %s22, 4
      // Predicated region
      $region25: #{tpu_custom_call.1} parent=5 // pred_check
        %p252 = pneg %p251
      $region26: #{tpu_custom_call.1} parent=5 // pred_check_branch
        %254 = sbr.rel (%p252) target = $region28
      $region27: #{tpu_custom_call.1} parent=5 // pred_region
        // Predicated region
        $region29: #{tpu_custom_call.1} parent=27 // pred_check
          %p255 = pneg %p54
        $region30: #{tpu_custom_call.1} parent=27 // pred_check_branch
          %257 = sbr.rel (%p255) target = $region32
        $region31: #{tpu_custom_call.1} parent=27 // pred_region
          %s258 = sand.u32 %s44, 1
          %s259 = scalar_lea.sflag [#allocation4], %s258
          %s260 = sand.u32 %s44, 1
          %s261 = smul.addr %s260, 128
          %s262 = scalar_lea.vmem [#allocation3], %s261
          %s263 = smul.u32 8, %s29
          %s265 = ssub.s32 2048, 2048
          %266 = vsyncadd %s259, %s265
          %s267 = smul.addr %s263, 2
          %s268 = smul.addr %s267, 128
          %s269 = scalar_lea.hbm %s0, %s268
          %s270 = sshll.u32 %s262, 4
          %s271 = int_to_ptr.vmem [resolvable:$true] %s270
          %276 = dma.hbm_to_vmem [thread:$0]  %s269, 2048, %s271, %s259, 256, 256, 16
        $region32: #{tpu_custom_call.1} parent=27 // pred_fallthru
          _
        // Predicated region
        $region33: #{tpu_custom_call.1} parent=27 // pred_check
          %p277 = pneg %p80
        $region34: #{tpu_custom_call.1} parent=27 // pred_check_branch
          %279 = sbr.rel (%p277) target = $region36
        $region35: #{tpu_custom_call.1} parent=27 // pred_region
          %s280 = sand.u32 %s22, 1
          %s281 = scalar_lea.sflag [#allocation7], %s280
          %s282 = sand.u32 %s70, 1
          %s283 = smul.addr %s282, 512
          %s284 = scalar_lea.vmem [#allocation6], %s283
          %s285 = smul.u32 2, %s30
          %s287 = ssub.s32 8192, 8192
          %288 = vsyncadd %s281, %s287
          %s289 = smul.addr %s285, 128
          %s290 = scalar_lea.hbm %s1, %s289
          %s291 = sshll.u32 %s284, 4
          %s292 = int_to_ptr.vmem [resolvable:$true] %s291
          %297 = dma.hbm_to_vmem [thread:$0]  %s290, 8192, %s292, %s281, 512, 256, 16
        $region36: #{tpu_custom_call.1} parent=27 // pred_fallthru
          _
        // Predicated region
        $region37: #{tpu_custom_call.1} parent=27 // pred_check
          %p298 = pneg %p106
        $region38: #{tpu_custom_call.1} parent=27 // pred_check_branch
          %300 = sbr.rel (%p298) target = $region40
        $region39: #{tpu_custom_call.1} parent=27 // pred_region
          %s301 = smul.u32 2, %s30
          %p302 = scmp.lt.s32.totalorder %s301, 3
          %s303 = scalar_select %p302, %s301, 3
          %s304 = scalar_lea.vmem %s2, %s303
          %s305 = smul.u32 2, %s30
        $region40: #{tpu_custom_call.1} parent=27 // pred_fallthru
          _
        // Predicated region
        $region41: #{tpu_custom_call.1} parent=27 // pred_check
          %p306 = pneg %p132
        $region42: #{tpu_custom_call.1} parent=27 // pred_check_branch
          %308 = sbr.rel (%p306) target = $region44
        $region43: #{tpu_custom_call.1} parent=27 // pred_region
          %s309 = sand.u32 %s22, 1
          %s310 = scalar_lea.sflag [#allocation7], %s309
          %s311 = sand.u32 %s122, 1
          %s312 = smul.addr %s311, 512
          %s313 = scalar_lea.vmem [#allocation8], %s312
          %s314 = smul.u32 32, %s30
          %s316 = ssub.s32 8192, 8192
          %317 = vsyncadd %s310, %s316
          %s318 = smul.addr %s314, 2
          %s319 = smul.addr %s318, 128
          %s320 = scalar_lea.hbm %s3, %s319
          %s321 = sshll.u32 %s313, 4
          %s322 = int_to_ptr.vmem [resolvable:$true] %s321
          %327 = dma.hbm_to_vmem [thread:$0]  %s320, 8192, %s322, %s310, 256, 256, 16
        $region44: #{tpu_custom_call.1} parent=27 // pred_fallthru
          _
      $region28: #{tpu_custom_call.1} parent=5 // pred_fallthru
        _
      %p328 = scmp.le.s32.totalorder 1, %s22
      %p329 = scmp.lt.s32.totalorder %s22, 5
      %p330 = pnand %p328, %p329
      %p331 = pneg %p330
      // Predicated region
      $region45: #{tpu_custom_call.1} parent=5 // pred_check
        _
      $region46: #{tpu_custom_call.1} parent=5 // pred_check_branch
        %333 = sbr.rel (%p330) target = $region48
      $region47: #{tpu_custom_call.1} parent=5 // pred_region
        %s334 = ssub.s32 %s22, 1
        %s335 = sand.u32 %s47, 1
        %s336 = scalar_lea.sflag [#allocation4], %s335
        %s337 = sand.u32 %s47, 1
        %s338 = smul.addr %s337, 128
        %s339 = scalar_lea.vmem [#allocation3], %s338
        // Predicated region
        $region49: #{tpu_custom_call.1} parent=47 // pred_check
          %p340 = pneg %p60
        $region50: #{tpu_custom_call.1} parent=47 // pred_check_branch
          %342 = sbr.rel (%p340) target = $region52
        $region51: #{tpu_custom_call.1} parent=47 // pred_region
          %343 = dma.done %s336, 2048
        $region52: #{tpu_custom_call.1} parent=47 // pred_fallthru
          _
        %s344 = sand.u32 %s27, 1
        %s345 = scalar_lea.sflag [#allocation7], %s344
        %s346 = sand.u32 %s73, 1
        %s347 = smul.addr %s346, 512
        %s348 = scalar_lea.vmem [#allocation6], %s347
        // Predicated region
        $region53: #{tpu_custom_call.1} parent=47 // pred_check
          %p349 = pneg %p86
        $region54: #{tpu_custom_call.1} parent=47 // pred_check_branch
          %351 = sbr.rel (%p349) target = $region56
        $region55: #{tpu_custom_call.1} parent=47 // pred_region
          %352 = dma.done %s345, 8192
        $region56: #{tpu_custom_call.1} parent=47 // pred_fallthru
          _
        %s353 = sand.u32 %s27, 1
        %s354 = scalar_lea.sflag [#allocation7], %s353
        %s355 = sand.u32 %s125, 1
        %s356 = smul.addr %s355, 512
        %s357 = scalar_lea.vmem [#allocation8], %s356
        // Predicated region
        $region57: #{tpu_custom_call.1} parent=47 // pred_check
          %p358 = pneg %p138
        $region58: #{tpu_custom_call.1} parent=47 // pred_check_branch
          %360 = sbr.rel (%p358) target = $region60
        $region59: #{tpu_custom_call.1} parent=47 // pred_region
          %361 = dma.done %s354, 8192
        $region60: #{tpu_custom_call.1} parent=47 // pred_fallthru
          _
        %s362 = sand.u32 %s47, 1
        %s363 = scalar_lea.sflag [#allocation4], %s362
        %s364 = sand.u32 %s47, 1
        %s365 = smul.addr %s364, 128
        %s366 = scalar_lea.vmem [#allocation3], %s365
        %p367 = pneg %p60
        %p368 = pneg %p57
        %s369 = sand.u32 %s27, 1
        %s370 = scalar_lea.sflag [#allocation7], %s369
        %s371 = sand.u32 %s73, 1
        %s372 = smul.addr %s371, 512
        %s373 = scalar_lea.vmem [#allocation6], %s372
        %p374 = pneg %p86
        %p375 = pneg %p83
        %s376 = smul.u32 2, %s32
        %p377 = scmp.lt.s32.totalorder %s376, 3
        %s378 = scalar_select %p377, %s376, 3
        %s379 = scalar_lea.vmem %s2, %s378
        %p380 = pneg %p112
        %p381 = pneg %p109
        %s382 = sand.u32 %s27, 1
        %s383 = scalar_lea.sflag [#allocation7], %s382
        %s384 = sand.u32 %s125, 1
        %s385 = smul.addr %s384, 512
        %s386 = scalar_lea.vmem [#allocation8], %s385
        %p387 = pneg %p138
        %p388 = pneg %p135
        %p389 = pneg %p159
        %p390 = pneg %p156
        %p391 = pneg %p180
        %p392 = pneg %p177
        %p393 = pneg %p201
        %p394 = pneg %p198
        %p395 = pneg %p227
        %p396 = pneg %p224
        %s397 = sand.u32 %s214, 1
        %s398 = scalar_lea.sflag [#allocation5], %s397
        %s399 = sand.u32 %s214, 1
        %s400 = smul.addr %s399, 128
        %s401 = scalar_lea.vmem [#allocation9], %s400
        %s402 = smul.u32 8, %s31
        %s403 = smul.u32 2, %s32
        %s404 = smul.u32 2, %s32
        %p405 = scmp.lt.s32.totalorder %s404, 3
        %s406 = scalar_select %p405, %s404, 3
        %s407 = scalar_lea.vmem %s2, %s406
        %s408 = smul.u32 2, %s32
        %s409 = smul.u32 32, %s32
        %s410 = smul.u32 8, %s31
        %v411 = vld [vmem:[%s339] sm:$0xff]
        %v412 = vld [vmem:[%s339 + $0x8] sm:$0xff]
        %v413 = vld [vmem:[%s339 + $0x10] sm:$0xff]
        %v414 = vld [vmem:[%s339 + $0x18] sm:$0xff]
        %v415 = vld [vmem:[%s339 + $0x20] sm:$0xff]
        %v416 = vld [vmem:[%s339 + $0x28] sm:$0xff]
        %v417 = vld [vmem:[%s339 + $0x30] sm:$0xff]
        %v418 = vld [vmem:[%s339 + $0x38] sm:$0xff]
        %v419 = vld [vmem:[%s339 + $0x40] sm:$0xff]
        %v420 = vld [vmem:[%s339 + $0x48] sm:$0xff]
        %v421 = vld [vmem:[%s339 + $0x50] sm:$0xff]
        %v422 = vld [vmem:[%s339 + $0x58] sm:$0xff]
        %v423 = vld [vmem:[%s339 + $0x60] sm:$0xff]
        %v424 = vld [vmem:[%s339 + $0x68] sm:$0xff]
        %v425 = vld [vmem:[%s339 + $0x70] sm:$0xff]
        %v426 = vld [vmem:[%s339 + $0x78] sm:$0xff]
        %v427 = vld [vmem:[%s348] sm:$0xff]
        %v428 = vld [vmem:[%s348 + $0x8] sm:$0xff]
        %v429 = vld [vmem:[%s348 + $0x10] sm:$0xff]
        %v430 = vld [vmem:[%s348 + $0x18] sm:$0xff]
        %v431 = vld [vmem:[%s348 + $0x20] sm:$0xff]
        %v432 = vld [vmem:[%s348 + $0x28] sm:$0xff]
        %v433 = vld [vmem:[%s348 + $0x30] sm:$0xff]
        %v434 = vld [vmem:[%s348 + $0x38] sm:$0xff]
        %v435 = vld [vmem:[%s348 + $0x40] sm:$0xff]
        %v436 = vld [vmem:[%s348 + $0x48] sm:$0xff]
        %v437 = vld [vmem:[%s348 + $0x50] sm:$0xff]
        %v438 = vld [vmem:[%s348 + $0x58] sm:$0xff]
        %v439 = vld [vmem:[%s348 + $0x60] sm:$0xff]
        %v440 = vld [vmem:[%s348 + $0x68] sm:$0xff]
        %v441 = vld [vmem:[%s348 + $0x70] sm:$0xff]
        %v442 = vld [vmem:[%s348 + $0x78] sm:$0xff]
        %v443 = vld [vmem:[%s348 + $0x80] sm:$0xff]
        %v444 = vld [vmem:[%s348 + $0x88] sm:$0xff]
        %v445 = vld [vmem:[%s348 + $0x90] sm:$0xff]
        %v446 = vld [vmem:[%s348 + $0x98] sm:$0xff]
        %v447 = vld [vmem:[%s348 + $0xa0] sm:$0xff]
        %v448 = vld [vmem:[%s348 + $0xa8] sm:$0xff]
        %v449 = vld [vmem:[%s348 + $0xb0] sm:$0xff]
        %v450 = vld [vmem:[%s348 + $0xb8] sm:$0xff]
        %v451 = vld [vmem:[%s348 + $0xc0] sm:$0xff]
        %v452 = vld [vmem:[%s348 + $0xc8] sm:$0xff]
        %v453 = vld [vmem:[%s348 + $0xd0] sm:$0xff]
        %v454 = vld [vmem:[%s348 + $0xd8] sm:$0xff]
        %v455 = vld [vmem:[%s348 + $0xe0] sm:$0xff]
        %v456 = vld [vmem:[%s348 + $0xe8] sm:$0xff]
        %v457 = vld [vmem:[%s348 + $0xf0] sm:$0xff]
        %v458 = vld [vmem:[%s348 + $0xf8] sm:$0xff]
        %v459 = vld [vmem:[%s348 + $0x100] sm:$0xff]
        %v460 = vld [vmem:[%s348 + $0x108] sm:$0xff]
        %v461 = vld [vmem:[%s348 + $0x110] sm:$0xff]
        %v462 = vld [vmem:[%s348 + $0x118] sm:$0xff]
        %v463 = vld [vmem:[%s348 + $0x120] sm:$0xff]
        %v464 = vld [vmem:[%s348 + $0x128] sm:$0xff]
        %v465 = vld [vmem:[%s348 + $0x130] sm:$0xff]
        %v466 = vld [vmem:[%s348 + $0x138] sm:$0xff]
        %v467 = vld [vmem:[%s348 + $0x140] sm:$0xff]
        %v468 = vld [vmem:[%s348 + $0x148] sm:$0xff]
        %v469 = vld [vmem:[%s348 + $0x150] sm:$0xff]
        %v470 = vld [vmem:[%s348 + $0x158] sm:$0xff]
        %v471 = vld [vmem:[%s348 + $0x160] sm:$0xff]
        %v472 = vld [vmem:[%s348 + $0x168] sm:$0xff]
        %v473 = vld [vmem:[%s348 + $0x170] sm:$0xff]
        %v474 = vld [vmem:[%s348 + $0x178] sm:$0xff]
        %v475 = vld [vmem:[%s348 + $0x180] sm:$0xff]
        %v476 = vld [vmem:[%s348 + $0x188] sm:$0xff]
        %v477 = vld [vmem:[%s348 + $0x190] sm:$0xff]
        %v478 = vld [vmem:[%s348 + $0x198] sm:$0xff]
        %v479 = vld [vmem:[%s348 + $0x1a0] sm:$0xff]
        %v480 = vld [vmem:[%s348 + $0x1a8] sm:$0xff]
        %v481 = vld [vmem:[%s348 + $0x1b0] sm:$0xff]
        %v482 = vld [vmem:[%s348 + $0x1b8] sm:$0xff]
        %v483 = vld [vmem:[%s348 + $0x1c0] sm:$0xff]
        %v484 = vld [vmem:[%s348 + $0x1c8] sm:$0xff]
        %v485 = vld [vmem:[%s348 + $0x1d0] sm:$0xff]
        %v486 = vld [vmem:[%s348 + $0x1d8] sm:$0xff]
        %v487 = vld [vmem:[%s348 + $0x1e0] sm:$0xff]
        %v488 = vld [vmem:[%s348 + $0x1e8] sm:$0xff]
        %v489 = vld [vmem:[%s348 + $0x1f0] sm:$0xff]
        %v490 = vld [vmem:[%s348 + $0x1f8] sm:$0xff]
        %v491 = vld [vmem:[%s357] sm:$0xff]
        %v492 = vld [vmem:[%s357 + $0x8] sm:$0xff]
        %v493 = vld [vmem:[%s357 + $0x10] sm:$0xff]
        %v494 = vld [vmem:[%s357 + $0x18] sm:$0xff]
        %v495 = vld [vmem:[%s357 + $0x20] sm:$0xff]
        %v496 = vld [vmem:[%s357 + $0x28] sm:$0xff]
        %v497 = vld [vmem:[%s357 + $0x30] sm:$0xff]
        %v498 = vld [vmem:[%s357 + $0x38] sm:$0xff]
        %v499 = vld [vmem:[%s357 + $0x40] sm:$0xff]
        %v500 = vld [vmem:[%s357 + $0x48] sm:$0xff]
        %v501 = vld [vmem:[%s357 + $0x50] sm:$0xff]
        %v502 = vld [vmem:[%s357 + $0x58] sm:$0xff]
        %v503 = vld [vmem:[%s357 + $0x60] sm:$0xff]
        %v504 = vld [vmem:[%s357 + $0x68] sm:$0xff]
        %v505 = vld [vmem:[%s357 + $0x70] sm:$0xff]
        %v506 = vld [vmem:[%s357 + $0x78] sm:$0xff]
        %v507 = vld [vmem:[%s357 + $0x80] sm:$0xff]
        %v508 = vld [vmem:[%s357 + $0x88] sm:$0xff]
        %v509 = vld [vmem:[%s357 + $0x90] sm:$0xff]
        %v510 = vld [vmem:[%s357 + $0x98] sm:$0xff]
        %v511 = vld [vmem:[%s357 + $0xa0] sm:$0xff]
        %v512 = vld [vmem:[%s357 + $0xa8] sm:$0xff]
        %v513 = vld [vmem:[%s357 + $0xb0] sm:$0xff]
        %v514 = vld [vmem:[%s357 + $0xb8] sm:$0xff]
        %v515 = vld [vmem:[%s357 + $0xc0] sm:$0xff]
        %v516 = vld [vmem:[%s357 + $0xc8] sm:$0xff]
        %v517 = vld [vmem:[%s357 + $0xd0] sm:$0xff]
        %v518 = vld [vmem:[%s357 + $0xd8] sm:$0xff]
        %v519 = vld [vmem:[%s357 + $0xe0] sm:$0xff]
        %v520 = vld [vmem:[%s357 + $0xe8] sm:$0xff]
        %v521 = vld [vmem:[%s357 + $0xf0] sm:$0xff]
        %v522 = vld [vmem:[%s357 + $0xf8] sm:$0xff]
        %v523 = vld [vmem:[%s357 + $0x100] sm:$0xff]
        %v524 = vld [vmem:[%s357 + $0x108] sm:$0xff]
        %v525 = vld [vmem:[%s357 + $0x110] sm:$0xff]
        %v526 = vld [vmem:[%s357 + $0x118] sm:$0xff]
        %v527 = vld [vmem:[%s357 + $0x120] sm:$0xff]
        %v528 = vld [vmem:[%s357 + $0x128] sm:$0xff]
        %v529 = vld [vmem:[%s357 + $0x130] sm:$0xff]
        %v530 = vld [vmem:[%s357 + $0x138] sm:$0xff]
        %v531 = vld [vmem:[%s357 + $0x140] sm:$0xff]
        %v532 = vld [vmem:[%s357 + $0x148] sm:$0xff]
        %v533 = vld [vmem:[%s357 + $0x150] sm:$0xff]
        %v534 = vld [vmem:[%s357 + $0x158] sm:$0xff]
        %v535 = vld [vmem:[%s357 + $0x160] sm:$0xff]
        %v536 = vld [vmem:[%s357 + $0x168] sm:$0xff]
        %v537 = vld [vmem:[%s357 + $0x170] sm:$0xff]
        %v538 = vld [vmem:[%s357 + $0x178] sm:$0xff]
        %v539 = vld [vmem:[%s357 + $0x180] sm:$0xff]
        %v540 = vld [vmem:[%s357 + $0x188] sm:$0xff]
        %v541 = vld [vmem:[%s357 + $0x190] sm:$0xff]
        %v542 = vld [vmem:[%s357 + $0x198] sm:$0xff]
        %v543 = vld [vmem:[%s357 + $0x1a0] sm:$0xff]
        %v544 = vld [vmem:[%s357 + $0x1a8] sm:$0xff]
        %v545 = vld [vmem:[%s357 + $0x1b0] sm:$0xff]
        %v546 = vld [vmem:[%s357 + $0x1b8] sm:$0xff]
        %v547 = vld [vmem:[%s357 + $0x1c0] sm:$0xff]
        %v548 = vld [vmem:[%s357 + $0x1c8] sm:$0xff]
        %v549 = vld [vmem:[%s357 + $0x1d0] sm:$0xff]
        %v550 = vld [vmem:[%s357 + $0x1d8] sm:$0xff]
        %v551 = vld [vmem:[%s357 + $0x1e0] sm:$0xff]
        %v552 = vld [vmem:[%s357 + $0x1e8] sm:$0xff]
        %v553 = vld [vmem:[%s357 + $0x1f0] sm:$0xff]
        %v554 = vld [vmem:[%s357 + $0x1f8] sm:$0xff]
        %v555 = vld [vmem:[%s407] sm:$0x3]
        %v557 = vlaneseq
        %v558 = vshrl.u32 %v557, 7
        %v559 = vsub.s32 0, %v558
        %v560 = vrot.slane %v555, %v559
        %v561 = vlaneseq
        %v562 = vshrl.u32 %v561, 7
        %v563 = vsub.s32 1, %v562
        %v564 = vrot.slane %v555, %v563
        %567 = vmatprep.subr.mxu0 %v428
        %568 = vmatpush1.msra.mxu0 %v427
        %569 = vmatprep.subr.mxu0 %v430
        %570 = vmatpush1.msra.mxu0 %v429
        %571 = vmatprep.subr.mxu0 %v432
        %572 = vmatpush1.msra.mxu0 %v431
        %573 = vmatprep.subr.mxu0 %v434
        %574 = vmatpush1.msra.mxu0 %v433
        %575 = vmatprep.subr.mxu0 %v436
        %576 = vmatpush1.msra.mxu0 %v435
        %577 = vmatprep.subr.mxu0 %v438
        %578 = vmatpush1.msra.mxu0 %v437
        %579 = vmatprep.subr.mxu0 %v440
        %580 = vmatpush1.msra.mxu0 %v439
        %581 = vmatprep.subr.mxu0 %v442
        %582 = vmatpush1.msra.mxu0 %v441
        %583 = vmatprep.subr.mxu0 %v444
        %584 = vmatpush1.msra.mxu0 %v443
        %585 = vmatprep.subr.mxu0 %v446
        %586 = vmatpush1.msra.mxu0 %v445
        %587 = vmatprep.subr.mxu0 %v448
        %588 = vmatpush1.msra.mxu0 %v447
        %589 = vmatprep.subr.mxu0 %v450
        %590 = vmatpush1.msra.mxu0 %v449
        %591 = vmatprep.subr.mxu0 %v452
        %592 = vmatpush1.msra.mxu0 %v451
        %593 = vmatprep.subr.mxu0 %v454
        %594 = vmatpush1.msra.mxu0 %v453
        %595 = vmatprep.subr.mxu0 %v456
        %596 = vmatpush1.msra.mxu0 %v455
        %597 = vmatprep.subr.mxu0 %v458
        %598 = vmatpush1.msra.mxu0 %v457
        %599 = vmatprep.subr.mxu0 %v460
        %600 = vmatpush1.msra.mxu0 %v459
        %601 = vmatprep.subr.mxu0 %v462
        %602 = vmatpush1.msra.mxu0 %v461
        %603 = vmatprep.subr.mxu0 %v464
        %604 = vmatpush1.msra.mxu0 %v463
        %605 = vmatprep.subr.mxu0 %v466
        %606 = vmatpush1.msra.mxu0 %v465
        %607 = vmatprep.subr.mxu0 %v468
        %608 = vmatpush1.msra.mxu0 %v467
        %609 = vmatprep.subr.mxu0 %v470
        %610 = vmatpush1.msra.mxu0 %v469
        %611 = vmatprep.subr.mxu0 %v472
        %612 = vmatpush1.msra.mxu0 %v471
        %613 = vmatprep.subr.mxu0 %v474
        %614 = vmatpush1.msra.mxu0 %v473
        %615 = vmatprep.subr.mxu0 %v476
        %616 = vmatpush1.msra.mxu0 %v475
        %617 = vmatprep.subr.mxu0 %v478
        %618 = vmatpush1.msra.mxu0 %v477
        %619 = vmatprep.subr.mxu0 %v480
        %620 = vmatpush1.msra.mxu0 %v479
        %621 = vmatprep.subr.mxu0 %v482
        %622 = vmatpush1.msra.mxu0 %v481
        %623 = vmatprep.subr.mxu0 %v484
        %624 = vmatpush1.msra.mxu0 %v483
        %625 = vmatprep.subr.mxu0 %v486
        %626 = vmatpush1.msra.mxu0 %v485
        %627 = vmatprep.subr.mxu0 %v488
        %628 = vmatpush1.msra.mxu0 %v487
        %629 = vmatprep.subr.mxu0 %v490
        %630 = vmatpush1.msra.mxu0 %v489
        %631 = vmatprep.mubr.f32.mxu0 %v412
        %632 = vmatmul.mubr.f32.gmra.mrb[0].mxu0 %v411
        %v633 = vpop.f32.mrb[0].mxu0
        %v634 = vadd.f32 %v560, %v633
        %v635 = vpop.f32.mrb[0].mxu0
        %v636 = vadd.f32 %v564, %v635
        %637 = vmatprep.mubr.f32.mxu0 %v414
        %638 = vmatmul.mubr.f32.gmra.mrb[0].mxu0 %v413
        %v639 = vpop.f32.mrb[0].mxu0
        %v640 = vadd.f32 %v560, %v639
        %v641 = vpop.f32.mrb[0].mxu0
        %v642 = vadd.f32 %v564, %v641
        %643 = vmatprep.mubr.f32.mxu0 %v416
        %644 = vmatmul.mubr.f32.gmra.mrb[0].mxu0 %v415
        %v645 = vpop.f32.mrb[0].mxu0
        %v646 = vadd.f32 %v560, %v645
        %v647 = vpop.f32.mrb[0].mxu0
        %v648 = vadd.f32 %v564, %v647
        %649 = vmatprep.mubr.f32.mxu0 %v418
        %650 = vmatmul.mubr.f32.gmra.mrb[0].mxu0 %v417
        %v651 = vpop.f32.mrb[0].mxu0
        %v652 = vadd.f32 %v560, %v651
        %v653 = vpop.f32.mrb[0].mxu0
        %v654 = vadd.f32 %v564, %v653
        %655 = vmatprep.mubr.f32.mxu0 %v420
        %656 = vmatmul.mubr.f32.gmra.mrb[0].mxu0 %v419
        %v657 = vpop.f32.mrb[0].mxu0
        %v658 = vadd.f32 %v560, %v657
        %v659 = vpop.f32.mrb[0].mxu0
        %v660 = vadd.f32 %v564, %v659
        %661 = vmatprep.mubr.f32.mxu0 %v422
        %662 = vmatmul.mubr.f32.gmra.mrb[0].mxu0 %v421
        %v663 = vpop.f32.mrb[0].mxu0
        %v664 = vadd.f32 %v560, %v663
        %v665 = vpop.f32.mrb[0].mxu0
        %v666 = vadd.f32 %v564, %v665
        %667 = vmatprep.mubr.f32.mxu0 %v424
        %668 = vmatmul.mubr.f32.gmra.mrb[0].mxu0 %v423
        %v669 = vpop.f32.mrb[0].mxu0
        %v670 = vadd.f32 %v560, %v669
        %v671 = vpop.f32.mrb[0].mxu0
        %v672 = vadd.f32 %v564, %v671
        %673 = vmatprep.mubr.f32.mxu0 %v426
        %674 = vmatmul.mubr.f32.gmra.mrb[0].mxu0 %v425
        %v675 = vpop.f32.mrb[0].mxu0
        %v676 = vadd.f32 %v560, %v675
        %v677 = vpop.f32.mrb[0].mxu0
        %v678 = vadd.f32 %v564, %v677
        %679 = vdwg.mxu0
        %v680 = vmax.f32 %v634, 0.0
        %v681 = vmax.f32 %v636, 0.0
        %v682 = vmax.f32 %v640, 0.0
        %v683 = vmax.f32 %v642, 0.0
        %v684 = vmax.f32 %v646, 0.0
        %v685 = vmax.f32 %v648, 0.0
        %v686 = vmax.f32 %v652, 0.0
        %v687 = vmax.f32 %v654, 0.0
        %v688 = vmax.f32 %v658, 0.0
        %v689 = vmax.f32 %v660, 0.0
        %v690 = vmax.f32 %v664, 0.0
        %v691 = vmax.f32 %v666, 0.0
        %v692 = vmax.f32 %v670, 0.0
        %v693 = vmax.f32 %v672, 0.0
        %v694 = vmax.f32 %v676, 0.0
        %v695 = vmax.f32 %v678, 0.0
        %696 = vmatprep.subr.mxu0 %v492
        %697 = vmatpush1.msra.mxu0 %v491
        %698 = vmatprep.subr.mxu0 %v494
        %699 = vmatpush1.msra.mxu0 %v493
        %700 = vmatprep.subr.mxu0 %v496
        %701 = vmatpush1.msra.mxu0 %v495
        %702 = vmatprep.subr.mxu0 %v498
        %703 = vmatpush1.msra.mxu0 %v497
        %704 = vmatprep.subr.mxu0 %v500
        %705 = vmatpush1.msra.mxu0 %v499
        %706 = vmatprep.subr.mxu0 %v502
        %707 = vmatpush1.msra.mxu0 %v501
        %708 = vmatprep.subr.mxu0 %v504
        %709 = vmatpush1.msra.mxu0 %v503
        %710 = vmatprep.subr.mxu0 %v506
        %711 = vmatpush1.msra.mxu0 %v505
        %712 = vmatprep.subr.mxu0 %v508
        %713 = vmatpush1.msra.mxu0 %v507
        %714 = vmatprep.subr.mxu0 %v510
        %715 = vmatpush1.msra.mxu0 %v509
        %716 = vmatprep.subr.mxu0 %v512
        %717 = vmatpush1.msra.mxu0 %v511
        %718 = vmatprep.subr.mxu0 %v514
        %719 = vmatpush1.msra.mxu0 %v513
        %720 = vmatprep.subr.mxu0 %v516
        %721 = vmatpush1.msra.mxu0 %v515
        %722 = vmatprep.subr.mxu0 %v518
        %723 = vmatpush1.msra.mxu0 %v517
        %724 = vmatprep.subr.mxu0 %v520
        %725 = vmatpush1.msra.mxu0 %v519
        %726 = vmatprep.subr.mxu0 %v522
        %727 = vmatpush1.msra.mxu0 %v521
        %728 = vmatprep.subr.mxu0 %v524
        %729 = vmatpush1.msra.mxu0 %v523
        %730 = vmatprep.subr.mxu0 %v526
        %731 = vmatpush1.msra.mxu0 %v525
        %732 = vmatprep.subr.mxu0 %v528
        %733 = vmatpush1.msra.mxu0 %v527
        %734 = vmatprep.subr.mxu0 %v530
        %735 = vmatpush1.msra.mxu0 %v529
        %736 = vmatprep.subr.mxu0 %v532
        %737 = vmatpush1.msra.mxu0 %v531
        %738 = vmatprep.subr.mxu0 %v534
        %739 = vmatpush1.msra.mxu0 %v533
        %740 = vmatprep.subr.mxu0 %v536
        %741 = vmatpush1.msra.mxu0 %v535
        %742 = vmatprep.subr.mxu0 %v538
        %743 = vmatpush1.msra.mxu0 %v537
        %744 = vmatprep.subr.mxu0 %v540
        %745 = vmatpush1.msra.mxu0 %v539
        %746 = vmatprep.subr.mxu0 %v542
        %747 = vmatpush1.msra.mxu0 %v541
        %748 = vmatprep.subr.mxu0 %v544
        %749 = vmatpush1.msra.mxu0 %v543
        %750 = vmatprep.subr.mxu0 %v546
        %751 = vmatpush1.msra.mxu0 %v545
        %752 = vmatprep.subr.mxu0 %v548
        %753 = vmatpush1.msra.mxu0 %v547
        %754 = vmatprep.subr.mxu0 %v550
        %755 = vmatpush1.msra.mxu0 %v549
        %756 = vmatprep.subr.mxu0 %v552
        %757 = vmatpush1.msra.mxu0 %v551
        %758 = vmatprep.subr.mxu0 %v554
        %759 = vmatpush1.msra.mxu0 %v553
        %760 = vmatprep.mubr.f32.mxu0 %v681
        %761 = vmatmul.mubr.f32.gmra.mrb[0].mxu0 %v680
        %v762 = vpop.f32.mrb[0].mxu0
        %v763 = vadd.f32 0.0, %v762
        %v764 = vpop.f32.mrb[0].mxu0
        %v765 = vadd.f32 0.0, %v764
        %766 = vmatprep.mubr.f32.mxu0 %v683
        %767 = vmatmul.mubr.f32.gmra.mrb[0].mxu0 %v682
        %v768 = vpop.f32.mrb[0].mxu0
        %v769 = vadd.f32 0.0, %v768
        %v770 = vpop.f32.mrb[0].mxu0
        %v771 = vadd.f32 0.0, %v770
        %772 = vmatprep.mubr.f32.mxu0 %v685
        %773 = vmatmul.mubr.f32.gmra.mrb[0].mxu0 %v684
        %v774 = vpop.f32.mrb[0].mxu0
        %v775 = vadd.f32 0.0, %v774
        %v776 = vpop.f32.mrb[0].mxu0
        %v777 = vadd.f32 0.0, %v776
        %778 = vmatprep.mubr.f32.mxu0 %v687
        %779 = vmatmul.mubr.f32.gmra.mrb[0].mxu0 %v686
        %v780 = vpop.f32.mrb[0].mxu0
        %v781 = vadd.f32 0.0, %v780
        %v782 = vpop.f32.mrb[0].mxu0
        %v783 = vadd.f32 0.0, %v782
        %784 = vmatprep.mubr.f32.mxu0 %v689
        %785 = vmatmul.mubr.f32.gmra.mrb[0].mxu0 %v688
        %v786 = vpop.f32.mrb[0].mxu0
        %v787 = vadd.f32 0.0, %v786
        %v788 = vpop.f32.mrb[0].mxu0
        %v789 = vadd.f32 0.0, %v788
        %790 = vmatprep.mubr.f32.mxu0 %v691
        %791 = vmatmul.mubr.f32.gmra.mrb[0].mxu0 %v690
        %v792 = vpop.f32.mrb[0].mxu0
        %v793 = vadd.f32 0.0, %v792
        %v794 = vpop.f32.mrb[0].mxu0
        %v795 = vadd.f32 0.0, %v794
        %796 = vmatprep.mubr.f32.mxu0 %v693
        %797 = vmatmul.mubr.f32.gmra.mrb[0].mxu0 %v692
        %v798 = vpop.f32.mrb[0].mxu0
        %v799 = vadd.f32 0.0, %v798
        %v800 = vpop.f32.mrb[0].mxu0
        %v801 = vadd.f32 0.0, %v800
        %802 = vmatprep.mubr.f32.mxu0 %v695
        %803 = vmatmul.mubr.f32.gmra.mrb[0].mxu0 %v694
        %v804 = vpop.f32.mrb[0].mxu0
        %v805 = vadd.f32 0.0, %v804
        %v806 = vpop.f32.mrb[0].mxu0
        %v807 = vadd.f32 0.0, %v806
        %808 = vdwg.mxu0
        %p809 = scmp.eq.s32.totalorder %s32, 0
        // Predicated region
        $region61: #{tpu_custom_call.1} parent=47 // pred_check
          %p810 = pneg %p809
        $region62: #{tpu_custom_call.1} parent=47 // pred_check_branch
          %812 = sbr.rel (%p810) target = $region64
        $region63: #{tpu_custom_call.1} parent=47 // pred_region
          %813 = vst [vmem:[#allocation2] sm:$0xff] 0.0
          %814 = vst [vmem:[#allocation2 + $0x8] sm:$0xff] 0.0
          %815 = vst [vmem:[#allocation2 + $0x10] sm:$0xff] 0.0
          %816 = vst [vmem:[#allocation2 + $0x18] sm:$0xff] 0.0
          %817 = vst [vmem:[#allocation2 + $0x20] sm:$0xff] 0.0
          %818 = vst [vmem:[#allocation2 + $0x28] sm:$0xff] 0.0
          %819 = vst [vmem:[#allocation2 + $0x30] sm:$0xff] 0.0
          %820 = vst [vmem:[#allocation2 + $0x38] sm:$0xff] 0.0
          %821 = vst [vmem:[#allocation2 + $0x40] sm:$0xff] 0.0
          %822 = vst [vmem:[#allocation2 + $0x48] sm:$0xff] 0.0
          %823 = vst [vmem:[#allocation2 + $0x50] sm:$0xff] 0.0
          %824 = vst [vmem:[#allocation2 + $0x58] sm:$0xff] 0.0
          %825 = vst [vmem:[#allocation2 + $0x60] sm:$0xff] 0.0
          %826 = vst [vmem:[#allocation2 + $0x68] sm:$0xff] 0.0
          %827 = vst [vmem:[#allocation2 + $0x70] sm:$0xff] 0.0
          %828 = vst [vmem:[#allocation2 + $0x78] sm:$0xff] 0.0
        $region64: #{tpu_custom_call.1} parent=47 // pred_fallthru
          _
        %v829 = vld [vmem:[#allocation2] sm:$0xff]
        %v830 = vld [vmem:[#allocation2 + $0x8] sm:$0xff]
        %v831 = vld [vmem:[#allocation2 + $0x10] sm:$0xff]
        %v832 = vld [vmem:[#allocation2 + $0x18] sm:$0xff]
        %v833 = vld [vmem:[#allocation2 + $0x20] sm:$0xff]
        %v834 = vld [vmem:[#allocation2 + $0x28] sm:$0xff]
        %v835 = vld [vmem:[#allocation2 + $0x30] sm:$0xff]
        %v836 = vld [vmem:[#allocation2 + $0x38] sm:$0xff]
        %v837 = vld [vmem:[#allocation2 + $0x40] sm:$0xff]
        %v838 = vld [vmem:[#allocation2 + $0x48] sm:$0xff]
        %v839 = vld [vmem:[#allocation2 + $0x50] sm:$0xff]
        %v840 = vld [vmem:[#allocation2 + $0x58] sm:$0xff]
        %v841 = vld [vmem:[#allocation2 + $0x60] sm:$0xff]
        %v842 = vld [vmem:[#allocation2 + $0x68] sm:$0xff]
        %v843 = vld [vmem:[#allocation2 + $0x70] sm:$0xff]
        %v844 = vld [vmem:[#allocation2 + $0x78] sm:$0xff]
        %v845 = vadd.f32 %v829, %v763
        %v846 = vadd.f32 %v830, %v765
        %v847 = vadd.f32 %v831, %v769
        %v848 = vadd.f32 %v832, %v771
        %v849 = vadd.f32 %v833, %v775
        %v850 = vadd.f32 %v834, %v777
        %v851 = vadd.f32 %v835, %v781
        %v852 = vadd.f32 %v836, %v783
        %v853 = vadd.f32 %v837, %v787
        %v854 = vadd.f32 %v838, %v789
        %v855 = vadd.f32 %v839, %v793
        %v856 = vadd.f32 %v840, %v795
        %v857 = vadd.f32 %v841, %v799
        %v858 = vadd.f32 %v842, %v801
        %v859 = vadd.f32 %v843, %v805
        %v860 = vadd.f32 %v844, %v807
        %861 = vst [vmem:[#allocation2] sm:$0xff] %v845
        %862 = vst [vmem:[#allocation2 + $0x8] sm:$0xff] %v846
        %863 = vst [vmem:[#allocation2 + $0x10] sm:$0xff] %v847
        %864 = vst [vmem:[#allocation2 + $0x18] sm:$0xff] %v848
        %865 = vst [vmem:[#allocation2 + $0x20] sm:$0xff] %v849
        %866 = vst [vmem:[#allocation2 + $0x28] sm:$0xff] %v850
        %867 = vst [vmem:[#allocation2 + $0x30] sm:$0xff] %v851
        %868 = vst [vmem:[#allocation2 + $0x38] sm:$0xff] %v852
        %869 = vst [vmem:[#allocation2 + $0x40] sm:$0xff] %v853
        %870 = vst [vmem:[#allocation2 + $0x48] sm:$0xff] %v854
        %871 = vst [vmem:[#allocation2 + $0x50] sm:$0xff] %v855
        %872 = vst [vmem:[#allocation2 + $0x58] sm:$0xff] %v856
        %873 = vst [vmem:[#allocation2 + $0x60] sm:$0xff] %v857
        %874 = vst [vmem:[#allocation2 + $0x68] sm:$0xff] %v858
        %875 = vst [vmem:[#allocation2 + $0x70] sm:$0xff] %v859
        %876 = vst [vmem:[#allocation2 + $0x78] sm:$0xff] %v860
        %p877 = scmp.eq.s32.totalorder %s32, 1
        // Predicated region
        $region65: #{tpu_custom_call.1} parent=47 // pred_check
          %p878 = pneg %p877
        $region66: #{tpu_custom_call.1} parent=47 // pred_check_branch
          %880 = sbr.rel (%p878) target = $region68
        $region67: #{tpu_custom_call.1} parent=47 // pred_region
          %v881 = vld [vmem:[%s4] sm:$0x3]
          %v882 = vld [vmem:[%s5] sm:$0x3]
          %v883 = vld [vmem:[%s6] sm:$0x3]
          %v884 = vld [vmem:[#allocation2] sm:$0xff]
          %v885 = vld [vmem:[#allocation2 + $0x8] sm:$0xff]
          %v886 = vld [vmem:[#allocation2 + $0x10] sm:$0xff]
          %v887 = vld [vmem:[#allocation2 + $0x18] sm:$0xff]
          %v888 = vld [vmem:[#allocation2 + $0x20] sm:$0xff]
          %v889 = vld [vmem:[#allocation2 + $0x28] sm:$0xff]
          %v890 = vld [vmem:[#allocation2 + $0x30] sm:$0xff]
          %v891 = vld [vmem:[#allocation2 + $0x38] sm:$0xff]
          %v892 = vld [vmem:[#allocation2 + $0x40] sm:$0xff]
          %v893 = vld [vmem:[#allocation2 + $0x48] sm:$0xff]
          %v894 = vld [vmem:[#allocation2 + $0x50] sm:$0xff]
          %v895 = vld [vmem:[#allocation2 + $0x58] sm:$0xff]
          %v896 = vld [vmem:[#allocation2 + $0x60] sm:$0xff]
          %v897 = vld [vmem:[#allocation2 + $0x68] sm:$0xff]
          %v898 = vld [vmem:[#allocation2 + $0x70] sm:$0xff]
          %v899 = vld [vmem:[#allocation2 + $0x78] sm:$0xff]
          %v901 = vlaneseq
          %v902 = vshrl.u32 %v901, 7
          %v903 = vsub.s32 0, %v902
          %v904 = vrot.slane %v881, %v903
          %v905 = vlaneseq
          %v906 = vshrl.u32 %v905, 7
          %v907 = vsub.s32 1, %v906
          %v908 = vrot.slane %v881, %v907
          %v911 = vadd.f32 %v884, %v904
          %v912 = vadd.f32 %v885, %v908
          %v913 = vadd.f32 %v886, %v904
          %v914 = vadd.f32 %v887, %v908
          %v915 = vadd.f32 %v888, %v904
          %v916 = vadd.f32 %v889, %v908
          %v917 = vadd.f32 %v890, %v904
          %v918 = vadd.f32 %v891, %v908
          %v919 = vadd.f32 %v892, %v904
          %v920 = vadd.f32 %v893, %v908
          %v921 = vadd.f32 %v894, %v904
          %v922 = vadd.f32 %v895, %v908
          %v923 = vadd.f32 %v896, %v904
          %v924 = vadd.f32 %v897, %v908
          %v925 = vadd.f32 %v898, %v904
          %v926 = vadd.f32 %v899, %v908
          %v927 = vadd.f32 %v911, %v411
          %v928 = vadd.f32 %v912, %v412
          %v929 = vadd.f32 %v913, %v413
          %v930 = vadd.f32 %v914, %v414
          %v931 = vadd.f32 %v915, %v415
          %v932 = vadd.f32 %v916, %v416
          %v933 = vadd.f32 %v917, %v417
          %v934 = vadd.f32 %v918, %v418
          %v935 = vadd.f32 %v919, %v419
          %v936 = vadd.f32 %v920, %v420
          %v937 = vadd.f32 %v921, %v421
          %v938 = vadd.f32 %v922, %v422
          %v939 = vadd.f32 %v923, %v423
          %v940 = vadd.f32 %v924, %v424
          %v941 = vadd.f32 %v925, %v425
          %v942 = vadd.f32 %v926, %v426
          %v943 = vadd.f32 %v927, %v928
          %944 = vadd.xlane.f32.xlu0 %v943
          %v945 = vpop.xlane.xlu0 %944
          %v946 = vadd.f32 %v929, %v930
          %947 = vadd.xlane.f32.xlu0 %v946
          %v948 = vpop.xlane.xlu0 %947
          %v949 = vadd.f32 %v931, %v932
          %950 = vadd.xlane.f32.xlu0 %v949
          %v951 = vpop.xlane.xlu0 %950
          %v952 = vadd.f32 %v933, %v934
          %953 = vadd.xlane.f32.xlu0 %v952
          %v954 = vpop.xlane.xlu0 %953
          %v955 = vadd.f32 %v935, %v936
          %956 = vadd.xlane.f32.xlu0 %v955
          %v957 = vpop.xlane.xlu0 %956
          %v958 = vadd.f32 %v937, %v938
          %959 = vadd.xlane.f32.xlu0 %v958
          %v960 = vpop.xlane.xlu0 %959
          %v961 = vadd.f32 %v939, %v940
          %962 = vadd.xlane.f32.xlu0 %v961
          %v963 = vpop.xlane.xlu0 %962
          %v964 = vadd.f32 %v941, %v942
          %965 = vadd.xlane.f32.xlu0 %v964
          %v966 = vpop.xlane.xlu0 %965
          %v967 = vmul.f32 %v945, 0.00390625
          %v968 = vmul.f32 %v948, 0.00390625
          %v969 = vmul.f32 %v951, 0.00390625
          %v970 = vmul.f32 %v954, 0.00390625
          %v971 = vmul.f32 %v957, 0.00390625
          %v972 = vmul.f32 %v960, 0.00390625
          %v973 = vmul.f32 %v963, 0.00390625
          %v974 = vmul.f32 %v966, 0.00390625
          %v975 = vmul.f32 %v927, %v927
          %v976 = vmul.f32 %v928, %v928
          %v977 = vmul.f32 %v929, %v929
          %v978 = vmul.f32 %v930, %v930
          %v979 = vmul.f32 %v931, %v931
          %v980 = vmul.f32 %v932, %v932
          %v981 = vmul.f32 %v933, %v933
          %v982 = vmul.f32 %v934, %v934
          %v983 = vmul.f32 %v935, %v935
          %v984 = vmul.f32 %v936, %v936
          %v985 = vmul.f32 %v937, %v937
          %v986 = vmul.f32 %v938, %v938
          %v987 = vmul.f32 %v939, %v939
          %v988 = vmul.f32 %v940, %v940
          %v989 = vmul.f32 %v941, %v941
          %v990 = vmul.f32 %v942, %v942
          %v991 = vadd.f32 %v975, %v976
          %992 = vadd.xlane.f32.xlu0 %v991
          %v993 = vpop.xlane.xlu0 %992
          %v994 = vadd.f32 %v977, %v978
          %995 = vadd.xlane.f32.xlu0 %v994
          %v996 = vpop.xlane.xlu0 %995
          %v997 = vadd.f32 %v979, %v980
          %998 = vadd.xlane.f32.xlu0 %v997
          %v999 = vpop.xlane.xlu0 %998
          %v1000 = vadd.f32 %v981, %v982
          %1001 = vadd.xlane.f32.xlu0 %v1000
          %v1002 = vpop.xlane.xlu0 %1001
          %v1003 = vadd.f32 %v983, %v984
          %1004 = vadd.xlane.f32.xlu0 %v1003
          %v1005 = vpop.xlane.xlu0 %1004
          %v1006 = vadd.f32 %v985, %v986
          %1007 = vadd.xlane.f32.xlu0 %v1006
          %v1008 = vpop.xlane.xlu0 %1007
          %v1009 = vadd.f32 %v987, %v988
          %1010 = vadd.xlane.f32.xlu0 %v1009
          %v1011 = vpop.xlane.xlu0 %1010
          %v1012 = vadd.f32 %v989, %v990
          %1013 = vadd.xlane.f32.xlu0 %v1012
          %v1014 = vpop.xlane.xlu0 %1013
          %v1015 = vmul.f32 %v993, 0.00390625
          %v1016 = vmul.f32 %v996, 0.00390625
          %v1017 = vmul.f32 %v999, 0.00390625
          %v1018 = vmul.f32 %v1002, 0.00390625
          %v1019 = vmul.f32 %v1005, 0.00390625
          %v1020 = vmul.f32 %v1008, 0.00390625
          %v1021 = vmul.f32 %v1011, 0.00390625
          %v1022 = vmul.f32 %v1014, 0.00390625
          %v1023 = vmul.f32 %v967, %v967
          %v1024 = vmul.f32 %v968, %v968
          %v1025 = vmul.f32 %v969, %v969
          %v1026 = vmul.f32 %v970, %v970
          %v1027 = vmul.f32 %v971, %v971
          %v1028 = vmul.f32 %v972, %v972
          %v1029 = vmul.f32 %v973, %v973
          %v1030 = vmul.f32 %v974, %v974
          %v1031 = vsub.f32 %v1015, %v1023
          %v1032 = vsub.f32 %v1016, %v1024
          %v1033 = vsub.f32 %v1017, %v1025
          %v1034 = vsub.f32 %v1018, %v1026
          %v1035 = vsub.f32 %v1019, %v1027
          %v1036 = vsub.f32 %v1020, %v1028
          %v1037 = vsub.f32 %v1021, %v1029
          %v1038 = vsub.f32 %v1022, %v1030
          %v1039 = vmax.f32 %v1031, 0.0
          %v1040 = vmax.f32 %v1032, 0.0
          %v1041 = vmax.f32 %v1033, 0.0
          %v1042 = vmax.f32 %v1034, 0.0
          %v1043 = vmax.f32 %v1035, 0.0
          %v1044 = vmax.f32 %v1036, 0.0
          %v1045 = vmax.f32 %v1037, 0.0
          %v1046 = vmax.f32 %v1038, 0.0
          %v1047 = vsub.f32 %v927, %v967
          %v1048 = vsub.f32 %v928, %v967
          %v1049 = vsub.f32 %v929, %v968
          %v1050 = vsub.f32 %v930, %v968
          %v1051 = vsub.f32 %v931, %v969
          %v1052 = vsub.f32 %v932, %v969
          %v1053 = vsub.f32 %v933, %v970
          %v1054 = vsub.f32 %v934, %v970
          %v1055 = vsub.f32 %v935, %v971
          %v1056 = vsub.f32 %v936, %v971
          %v1057 = vsub.f32 %v937, %v972
          %v1058 = vsub.f32 %v938, %v972
          %v1059 = vsub.f32 %v939, %v973
          %v1060 = vsub.f32 %v940, %v973
          %v1061 = vsub.f32 %v941, %v974
          %v1062 = vsub.f32 %v942, %v974
          %v1063 = vadd.f32 %v1039, 1e-06
          %v1064 = vadd.f32 %v1040, 1e-06
          %v1065 = vadd.f32 %v1041, 1e-06
          %v1066 = vadd.f32 %v1042, 1e-06
          %v1067 = vadd.f32 %v1043, 1e-06
          %v1068 = vadd.f32 %v1044, 1e-06
          %v1069 = vadd.f32 %v1045, 1e-06
          %v1070 = vadd.f32 %v1046, 1e-06
          %v1071 = vrsqrt.pop %v1063
          %v1072 = vrsqrt.pop %v1064
          %v1073 = vrsqrt.pop %v1065
          %v1074 = vrsqrt.pop %v1066
          %v1075 = vrsqrt.pop %v1067
          %v1076 = vrsqrt.pop %v1068
          %v1077 = vrsqrt.pop %v1069
          %v1078 = vrsqrt.pop %v1070
          %v1079 = vmul.f32 %v1047, %v1071
          %v1080 = vmul.f32 %v1048, %v1071
          %v1081 = vmul.f32 %v1049, %v1072
          %v1082 = vmul.f32 %v1050, %v1072
          %v1083 = vmul.f32 %v1051, %v1073
          %v1084 = vmul.f32 %v1052, %v1073
          %v1085 = vmul.f32 %v1053, %v1074
          %v1086 = vmul.f32 %v1054, %v1074
          %v1087 = vmul.f32 %v1055, %v1075
          %v1088 = vmul.f32 %v1056, %v1075
          %v1089 = vmul.f32 %v1057, %v1076
          %v1090 = vmul.f32 %v1058, %v1076
          %v1091 = vmul.f32 %v1059, %v1077
          %v1092 = vmul.f32 %v1060, %v1077
          %v1093 = vmul.f32 %v1061, %v1078
          %v1094 = vmul.f32 %v1062, %v1078
          %v1096 = vlaneseq
          %v1097 = vshrl.u32 %v1096, 7
          %v1098 = vsub.s32 0, %v1097
          %v1099 = vrot.slane %v882, %v1098
          %v1100 = vlaneseq
          %v1101 = vshrl.u32 %v1100, 7
          %v1102 = vsub.s32 1, %v1101
          %v1103 = vrot.slane %v882, %v1102
          %v1106 = vmul.f32 %v1079, %v1099
          %v1107 = vmul.f32 %v1080, %v1103
          %v1108 = vmul.f32 %v1081, %v1099
          %v1109 = vmul.f32 %v1082, %v1103
          %v1110 = vmul.f32 %v1083, %v1099
          %v1111 = vmul.f32 %v1084, %v1103
          %v1112 = vmul.f32 %v1085, %v1099
          %v1113 = vmul.f32 %v1086, %v1103
          %v1114 = vmul.f32 %v1087, %v1099
          %v1115 = vmul.f32 %v1088, %v1103
          %v1116 = vmul.f32 %v1089, %v1099
          %v1117 = vmul.f32 %v1090, %v1103
          %v1118 = vmul.f32 %v1091, %v1099
          %v1119 = vmul.f32 %v1092, %v1103
          %v1120 = vmul.f32 %v1093, %v1099
          %v1121 = vmul.f32 %v1094, %v1103
          %v1123 = vlaneseq
          %v1124 = vshrl.u32 %v1123, 7
          %v1125 = vsub.s32 0, %v1124
          %v1126 = vrot.slane %v883, %v1125
          %v1127 = vlaneseq
          %v1128 = vshrl.u32 %v1127, 7
          %v1129 = vsub.s32 1, %v1128
          %v1130 = vrot.slane %v883, %v1129
          %v1133 = vadd.f32 %v1106, %v1126
          %v1134 = vadd.f32 %v1107, %v1130
          %v1135 = vadd.f32 %v1108, %v1126
          %v1136 = vadd.f32 %v1109, %v1130
          %v1137 = vadd.f32 %v1110, %v1126
          %v1138 = vadd.f32 %v1111, %v1130
          %v1139 = vadd.f32 %v1112, %v1126
          %v1140 = vadd.f32 %v1113, %v1130
          %v1141 = vadd.f32 %v1114, %v1126
          %v1142 = vadd.f32 %v1115, %v1130
          %v1143 = vadd.f32 %v1116, %v1126
          %v1144 = vadd.f32 %v1117, %v1130
          %v1145 = vadd.f32 %v1118, %v1126
          %v1146 = vadd.f32 %v1119, %v1130
          %v1147 = vadd.f32 %v1120, %v1126
          %v1148 = vadd.f32 %v1121, %v1130
          %1149 = vst [vmem:[%s401] sm:$0xff] %v1133
          %1150 = vst [vmem:[%s401 + $0x8] sm:$0xff] %v1134
          %1151 = vst [vmem:[%s401 + $0x10] sm:$0xff] %v1135
          %1152 = vst [vmem:[%s401 + $0x18] sm:$0xff] %v1136
          %1153 = vst [vmem:[%s401 + $0x20] sm:$0xff] %v1137
          %1154 = vst [vmem:[%s401 + $0x28] sm:$0xff] %v1138
          %1155 = vst [vmem:[%s401 + $0x30] sm:$0xff] %v1139
          %1156 = vst [vmem:[%s401 + $0x38] sm:$0xff] %v1140
          %1157 = vst [vmem:[%s401 + $0x40] sm:$0xff] %v1141
          %1158 = vst [vmem:[%s401 + $0x48] sm:$0xff] %v1142
          %1159 = vst [vmem:[%s401 + $0x50] sm:$0xff] %v1143
          %1160 = vst [vmem:[%s401 + $0x58] sm:$0xff] %v1144
          %1161 = vst [vmem:[%s401 + $0x60] sm:$0xff] %v1145
          %1162 = vst [vmem:[%s401 + $0x68] sm:$0xff] %v1146
          %1163 = vst [vmem:[%s401 + $0x70] sm:$0xff] %v1147
          %1164 = vst [vmem:[%s401 + $0x78] sm:$0xff] %v1148
        $region68: #{tpu_custom_call.1} parent=47 // pred_fallthru
          _
        %s1165 = sand.u32 %s214, 1
        %s1166 = scalar_lea.sflag [#allocation5], %s1165
        %s1167 = sand.u32 %s214, 1
        %s1168 = smul.addr %s1167, 128
        %s1169 = scalar_lea.vmem [#allocation9], %s1168
        // Predicated region
        $region69: #{tpu_custom_call.1} parent=47 // pred_check
          %p1170 = pneg %p224
        $region70: #{tpu_custom_call.1} parent=47 // pred_check_branch
          %1172 = sbr.rel (%p1170) target = $region72
        $region71: #{tpu_custom_call.1} parent=47 // pred_region
          %s1173 = smul.u32 8, %s31
          %s1175 = ssub.s32 2048, 2048
          %1176 = vsyncadd %s1166, %s1175
          %s1177 = smul.addr %s1173, 2
          %s1178 = smul.addr %s1177, 128
          %s1179 = scalar_lea.hbm %s7, %s1178
          %s1180 = sshll.u32 %s1169, 4
          %s1181 = int_to_ptr.vmem [resolvable:$true] %s1180
          %1186 = dma.vmem_to_hbm [thread:$0]  %s1181, 2048, %s1179, %s1166, 256, 256, 16
        $region72: #{tpu_custom_call.1} parent=47 // pred_fallthru
          _
      $region48: #{tpu_custom_call.1} parent=5 // pred_fallthru
        _
      %p1187 = scmp.le.s32.totalorder 2, %s22
      // Predicated region
      $region73: #{tpu_custom_call.1} parent=5 // pred_check
        %p1188 = pneg %p1187
      $region74: #{tpu_custom_call.1} parent=5 // pred_check_branch
        %1190 = sbr.rel (%p1188) target = $region76
      $region75: #{tpu_custom_call.1} parent=5 // pred_region
        %s1191 = ssub.s32 %s22, 2
        // Predicated region
        $region77: #{tpu_custom_call.1} parent=75 // pred_check
          %p1192 = pneg %p230
        $region78: #{tpu_custom_call.1} parent=75 // pred_check_branch
          %1194 = sbr.rel (%p1192) target = $region80
        $region79: #{tpu_custom_call.1} parent=75 // pred_region
          %s1195 = sand.u32 %s215, 1
          %s1196 = scalar_lea.sflag [#allocation5], %s1195
          %s1197 = sand.u32 %s215, 1
          %s1198 = smul.addr %s1197, 128
          %s1199 = scalar_lea.vmem [#allocation9], %s1198
          %1200 = dma.done %s1196, 2048
        $region80: #{tpu_custom_call.1} parent=75 // pred_fallthru
          _
      $region76: #{tpu_custom_call.1} parent=5 // pred_fallthru
        _
    $region6: #{tpu_custom_call.1} parent=1 // loop_footer
      %s26 = sadd.s32 1, %s22
    $region7: #{tpu_custom_call.1} parent=1 // loop_footer_branch
      %21 = sbr.rel target = $region3
    $region8: #{tpu_custom_call.1} parent=1 // loop_exit
      _
    %1201 = vsyncpa [#allocation4], 1
    %s1202 = scalar_lea.sflag [#allocation4], 1
    %1203 = vsyncpa %s1202, 1
    %1204 = vsyncpa [#allocation7], 1
    %s1205 = scalar_lea.sflag [#allocation7], 1
    %1206 = vsyncpa %s1205, 1
    %1207 = vsyncpa [#allocation5], 1
    %s1208 = scalar_lea.sflag [#allocation5], 1
    %1209 = vsyncpa %s1208, 1

</llo_original>
